<compile_context>
chip_gen: v7x
topology: tpu7x:2x2x1
jax: 0.10.0
libtpu: 0.0.40
codegen_flags: <defaults>
</compile_context>

<pallas_src>
import functools

import jax
import jax.numpy as jnp
from jax.experimental import pallas as pl
from jax.experimental.pallas import tpu as pltpu

H1 = 128   # encoder hidden 1 / decoder hidden 2 (fixed by the module)
H2 = 64    # encoder hidden 2 / decoder hidden 1 (fixed by the module)


def _ru8(n):
    return (n + 7) // 8 * 8


# ----------------------------- Pallas kernel ------------------------------ #
def cvae_kernel(xin_ref, matp_ref, rows_ref, out_ref, *, input_dim, latent_dim):
    f32 = jnp.float32
    D, L = input_dim, latent_dim
    nD, nL = _ru8(D), _ru8(L)

    # static, 8-aligned row offsets into the packed weight slab
    O_W1X = 0                # we1x   (D, 128)            rows [0, nD)
    O_W2 = O_W1X + nD        # we2    (128, 64->128)      rows [nD, nD+128)
    O_WH = O_W2 + H1         # whead  (64, 2L -> 128,128) rows [.., +128)
    O_WD1Z = O_WH + H1       # wd1z   (L, 64 -> nL, 128)  rows [.., +nL)
    O_WD2 = O_WD1Z + nL      # wd2    (64,128 -> 128,128) rows [.., +128)
    O_WD3 = O_WD2 + H1       # wd3    (128, D -> 128,128) rows [.., +128)

    xin = xin_ref[...]                       # (B, D+1+L) packed [x | y | eps]
    y = xin[:, D:D + 1]                      # (B, 1)
    eps = xin[:, D + 1:D + 1 + L]            # (B, L)

    # ----- encoder layer 1: unrolled VPU broadcast-MAC (K = D, plus y) -----
    w1x = matp_ref[O_W1X:O_W1X + nD, :]      # (nD, 128)
    h = y * rows_ref[0:1, :] + rows_ref[1:2, :]          # y*we1y + be1
    for k in range(D):
        h = h + xin[:, k:k + 1] * w1x[k:k + 1, :]
    h = jnp.maximum(h, 0.0)                  # (B, 128)

    # ----- encoder layer 2 (MXU); lanes >= 64 stay exactly 0 -----
    h = jnp.dot(h, matp_ref[O_W2:O_W2 + H1, :], preferred_element_type=f32)
    h = jnp.maximum(h + rows_ref[2:3, :], 0.0)

    # ----- fused mu|logvar head (MXU); lanes >= 2L stay exactly 0 -----
    head = jnp.dot(h, matp_ref[O_WH:O_WH + H1, :], preferred_element_type=f32)
    head = head + rows_ref[3:4, :]           # (B, 128): [mu | logvar | 0...]

    mu = head[:, :L]
    logvar = head[:, L:2 * L]
    z = mu + eps * jnp.exp(0.5 * logvar)     # (B, L) reparameterize

    # ----- decoder layer 1: unrolled VPU broadcast-MAC (K = L, plus y) -----
    wz = matp_ref[O_WD1Z:O_WD1Z + nL, :]     # (nL, 128)
    d = y * rows_ref[4:5, :] + rows_ref[5:6, :]          # y*wd1y + bd1
    for k in range(L):
        d = d + z[:, k:k + 1] * wz[k:k + 1, :]
    d = jnp.maximum(d, 0.0)                  # (B, 128), lanes >= 64 are 0

    # ----- decoder layer 2 (MXU) -----
    d = jnp.dot(d, matp_ref[O_WD2:O_WD2 + H1, :], preferred_element_type=f32)
    d = jnp.maximum(d + rows_ref[6:7, :], 0.0)

    # ----- decoder layer 3 (MXU); lanes >= D stay exactly 0 -----
    x_hat = jnp.dot(d, matp_ref[O_WD3:O_WD3 + H1, :], preferred_element_type=f32)
    x_hat = x_hat + rows_ref[7:8, :]         # (B, 128)

    # ----- packed output slab [x_hat | mu | logvar | z | 0...] -----
    out_ref[...] = x_hat                             # aligned full-width store
    out_ref[:, D:D + 2 * L] = head[:, :2 * L]        # static lane-offset store
    out_ref[:, D + 2 * L:D + 3 * L] = z              # static lane-offset store


# ------------------------------ JAX wrapper -------------------------------- #
@functools.partial(jax.jit, static_argnames=("input_dim", "latent_dim"))
def cvae_forward(x, y, eps, packed, *, input_dim, latent_dim):
    matp, rows = packed
    B = x.shape[0]
    xin = jnp.concatenate([x, y, eps], axis=1)        # one input DMA

    slab = pl.pallas_call(
        functools.partial(cvae_kernel, input_dim=input_dim, latent_dim=latent_dim),
        out_shape=jax.ShapeDtypeStruct((B, 128), jnp.float32),
        in_specs=[pl.BlockSpec(memory_space=pltpu.MemorySpace.VMEM)] * 3,
        out_specs=pl.BlockSpec(memory_space=pltpu.MemorySpace.VMEM),
    )(xin, matp, rows)

    D, L = input_dim, latent_dim
    x_hat = slab[:, :D]
    mu = slab[:, D:D + L]
    logvar = slab[:, D + L:D + 2 * L]
    z = slab[:, D + 2 * L:D + 3 * L]
    return x_hat, mu, logvar, z


# ----------------------- deterministic parameter init ---------------------- #
def init_params(key, input_dim, latent_dim, cond_dim):
    """PyTorch-style Linear init (uniform +/- 1/sqrt(fan_in)); weights stored
    as (in, out).  Concat-matmuls are split along the input axis; mu/logvar
    heads are fused along the output axis."""
    assert cond_dim == 1, "broadcast-MAC path assumes cond_dim == 1"

    def linear(key, fan_in, fan_out):
        kw, kb = jax.random.split(key)
        bound = 1.0 / jnp.sqrt(fan_in)
        w = jax.random.uniform(kw, (fan_in, fan_out), jnp.float32, -bound, bound)
        b = jax.random.uniform(kb, (1, fan_out), jnp.float32, -bound, bound)
        return w, b

    keys = jax.random.split(key, 7)
    we1, be1 = linear(keys[0], input_dim + cond_dim, H1)
    we2, be2 = linear(keys[1], H1, H2)
    wmu, bmu = linear(keys[2], H2, latent_dim)
    wlv, blv = linear(keys[3], H2, latent_dim)
    wd1, bd1 = linear(keys[4], latent_dim + cond_dim, H2)
    wd2, bd2 = linear(keys[5], H2, H1)
    wd3, bd3 = linear(keys[6], H1, input_dim)

    we1x, we1y = we1[:input_dim], we1[input_dim:]
    wd1z, wd1y = wd1[:latent_dim], wd1[latent_dim:]
    whead = jnp.concatenate([wmu, wlv], axis=1)      # (64, 2L)
    bhead = jnp.concatenate([bmu, blv], axis=1)      # (1, 2L)

    return (we1x, we1y, be1, we2, be2, whead, bhead,
            wd1z, wd1y, bd1, wd2, bd2, wd3, bd3)


# ------------------- pack params into two VMEM slabs ----------------------- #
def pack_params(params, input_dim, latent_dim):
    (we1x, we1y, be1, we2, be2, whead, bhead,
     wd1z, wd1y, bd1, wd2, bd2, wd3, bd3) = params

    def pad(a, rows, cols=128):
        out = jnp.zeros((rows, cols), jnp.float32)
        return out.at[:a.shape[0], :a.shape[1]].set(a)

    matp = jnp.concatenate([
        pad(we1x, _ru8(input_dim)),   # rows for the encoder-L1 MAC loop
        pad(we2, H1),                 # (128, 64)  -> (128, 128)
        pad(whead, H1),               # (64, 2L)   -> (128, 128)
        pad(wd1z, _ru8(latent_dim)),  # (L, 64)    -> (nL, 128)
        pad(wd2, H1),                 # (64, 128)  -> (128, 128)
        pad(wd3, H1),                 # (128, D)   -> (128, 128)
    ], axis=0)

    rows = jnp.concatenate([
        pad(we1y, 1), pad(be1, 1), pad(be2, 1), pad(bhead, 1),
        pad(wd1y, 1), pad(bd1, 1), pad(bd2, 1), pad(bd3, 1),
    ], axis=0)                        # (8, 128)

    return matp, rows


# --------------------------- pure-JAX reference ----------------------------- #
def cvae_reference(x, y, eps, params, latent_dim):
    (we1x, we1y, be1, we2, be2, whead, bhead,
     wd1z, wd1y, bd1, wd2, bd2, wd3, bd3) = params
    xc = jnp.concatenate([x, y], axis=1)
    we1 = jnp.concatenate([we1x, we1y], axis=0)
    h = jnp.maximum(xc @ we1 + be1, 0.0)
    h = jnp.maximum(h @ we2 + be2, 0.0)
    head = h @ whead + bhead
    mu, logvar = head[:, :latent_dim], head[:, latent_dim:]
    z = mu + eps * jnp.exp(0.5 * logvar)
    zc = jnp.concatenate([z, y], axis=1)
    wd1 = jnp.concatenate([wd1z, wd1y], axis=0)
    d = jnp.maximum(zc @ wd1 + bd1, 0.0)
    d = jnp.maximum(d @ wd2 + bd2, 0.0)
    x_hat = d @ wd3 + bd3
    return x_hat, mu, logvar, z


# ---------------------------------- main ----------------------------------- #
if __name__ == "__main__":
    B, INPUT_DIM, LATENT_DIM, COND_DIM = 8, 16, 10, 1

    root = jax.random.PRNGKey(0)
    k_params, k_x, k_y, k_eps = jax.random.split(root, 4)

    params = init_params(k_params, INPUT_DIM, LATENT_DIM, COND_DIM)
    packed = pack_params(params, INPUT_DIM, LATENT_DIM)

    x = jax.random.normal(k_x, (B, INPUT_DIM), jnp.float32)
    y = jax.random.normal(k_y, (B, COND_DIM), jnp.float32)
    # eps plays the role of torch.randn_like(std); drawn once deterministically.
    eps = jax.random.normal(k_eps, (B, LATENT_DIM), jnp.float32)

    outs = cvae_forward(x, y, eps, packed,
                        input_dim=INPUT_DIM, latent_dim=LATENT_DIM)
    outs = jax.block_until_ready(outs)
    x_hat, mu, logvar, z = outs

    # correctness check against pure-JAX reference
    refs = cvae_reference(x, y, eps, params, LATENT_DIM)
    for got, ref in zip(outs, refs):
        assert got.shape == ref.shape and got.dtype == ref.dtype
        assert jnp.max(jnp.abs(got - ref)) < 1e-4, "mismatch vs reference"

    print("KERNEL_OK")
</pallas_src>

<mosaic_0001>
module attributes {stable_mosaic.version = 11 : i64} {
  func.func @cvae_kernel(%arg0: memref<8x27xf32, #tpu.memory_space<vmem>>, %arg1: memref<544x128xf32, #tpu.memory_space<vmem>>, %arg2: memref<8x128xf32, #tpu.memory_space<vmem>>, %arg3: memref<8x128xf32, #tpu.memory_space<vmem>>) attributes {dimension_semantics = [], scalar_prefetch = 0 : i64, scratch_operands = 0 : i64, tpu.core_type = #tpu.core_type<tc>} {
    %c0 = arith.constant 0 : index
    %c0_0 = arith.constant 0 : index
    %0 = vector.load %arg0[%c0, %c0_0] : memref<8x27xf32, #tpu.memory_space<vmem>>, vector<8x27xf32>
    %1 = vector.extract_strided_slice %0 {offsets = [0, 16], sizes = [8, 1], strides = [1, 1]} : vector<8x27xf32> to vector<8x1xf32>
    %2 = vector.extract_strided_slice %0 {offsets = [0, 17], sizes = [8, 10], strides = [1, 1]} : vector<8x27xf32> to vector<8x10xf32>
    %c0_1 = arith.constant 0 : index
    %c0_2 = arith.constant 0 : index
    %3 = vector.load %arg1[%c0_1, %c0_2] : memref<544x128xf32, #tpu.memory_space<vmem>>, vector<16x128xf32>
    %c0_3 = arith.constant 0 : index
    %c0_4 = arith.constant 0 : index
    %4 = vector.load %arg2[%c0_3, %c0_4] : memref<8x128xf32, #tpu.memory_space<vmem>>, vector<1x128xf32>
    %5 = vector.broadcast %1 : vector<8x1xf32> to vector<8x128xf32>
    %6 = vector.broadcast %4 : vector<1x128xf32> to vector<8x128xf32>
    %7 = arith.mulf %5, %6 : vector<8x128xf32>
    %c1 = arith.constant 1 : index
    %c0_5 = arith.constant 0 : index
    %8 = vector.load %arg2[%c1, %c0_5] : memref<8x128xf32, #tpu.memory_space<vmem>>, vector<1x128xf32>
    %9 = vector.broadcast %8 : vector<1x128xf32> to vector<8x128xf32>
    %10 = arith.addf %7, %9 : vector<8x128xf32>
    %11 = vector.extract_strided_slice %0 {offsets = [0, 0], sizes = [8, 1], strides = [1, 1]} : vector<8x27xf32> to vector<8x1xf32>
    %12 = vector.extract_strided_slice %3 {offsets = [0, 0], sizes = [1, 128], strides = [1, 1]} : vector<16x128xf32> to vector<1x128xf32>
    %13 = vector.broadcast %11 : vector<8x1xf32> to vector<8x128xf32>
    %14 = vector.broadcast %12 : vector<1x128xf32> to vector<8x128xf32>
    %15 = arith.mulf %13, %14 : vector<8x128xf32>
    %16 = arith.addf %10, %15 : vector<8x128xf32>
    %17 = vector.extract_strided_slice %0 {offsets = [0, 1], sizes = [8, 1], strides = [1, 1]} : vector<8x27xf32> to vector<8x1xf32>
    %18 = vector.extract_strided_slice %3 {offsets = [1, 0], sizes = [1, 128], strides = [1, 1]} : vector<16x128xf32> to vector<1x128xf32>
    %19 = vector.broadcast %17 : vector<8x1xf32> to vector<8x128xf32>
    %20 = vector.broadcast %18 : vector<1x128xf32> to vector<8x128xf32>
    %21 = arith.mulf %19, %20 : vector<8x128xf32>
    %22 = arith.addf %16, %21 : vector<8x128xf32>
    %23 = vector.extract_strided_slice %0 {offsets = [0, 2], sizes = [8, 1], strides = [1, 1]} : vector<8x27xf32> to vector<8x1xf32>
    %24 = vector.extract_strided_slice %3 {offsets = [2, 0], sizes = [1, 128], strides = [1, 1]} : vector<16x128xf32> to vector<1x128xf32>
    %25 = vector.broadcast %23 : vector<8x1xf32> to vector<8x128xf32>
    %26 = vector.broadcast %24 : vector<1x128xf32> to vector<8x128xf32>
    %27 = arith.mulf %25, %26 : vector<8x128xf32>
    %28 = arith.addf %22, %27 : vector<8x128xf32>
    %29 = vector.extract_strided_slice %0 {offsets = [0, 3], sizes = [8, 1], strides = [1, 1]} : vector<8x27xf32> to vector<8x1xf32>
    %30 = vector.extract_strided_slice %3 {offsets = [3, 0], sizes = [1, 128], strides = [1, 1]} : vector<16x128xf32> to vector<1x128xf32>
    %31 = vector.broadcast %29 : vector<8x1xf32> to vector<8x128xf32>
    %32 = vector.broadcast %30 : vector<1x128xf32> to vector<8x128xf32>
    %33 = arith.mulf %31, %32 : vector<8x128xf32>
    %34 = arith.addf %28, %33 : vector<8x128xf32>
    %35 = vector.extract_strided_slice %0 {offsets = [0, 4], sizes = [8, 1], strides = [1, 1]} : vector<8x27xf32> to vector<8x1xf32>
    %36 = vector.extract_strided_slice %3 {offsets = [4, 0], sizes = [1, 128], strides = [1, 1]} : vector<16x128xf32> to vector<1x128xf32>
    %37 = vector.broadcast %35 : vector<8x1xf32> to vector<8x128xf32>
    %38 = vector.broadcast %36 : vector<1x128xf32> to vector<8x128xf32>
    %39 = arith.mulf %37, %38 : vector<8x128xf32>
    %40 = arith.addf %34, %39 : vector<8x128xf32>
    %41 = vector.extract_strided_slice %0 {offsets = [0, 5], sizes = [8, 1], strides = [1, 1]} : vector<8x27xf32> to vector<8x1xf32>
    %42 = vector.extract_strided_slice %3 {offsets = [5, 0], sizes = [1, 128], strides = [1, 1]} : vector<16x128xf32> to vector<1x128xf32>
    %43 = vector.broadcast %41 : vector<8x1xf32> to vector<8x128xf32>
    %44 = vector.broadcast %42 : vector<1x128xf32> to vector<8x128xf32>
    %45 = arith.mulf %43, %44 : vector<8x128xf32>
    %46 = arith.addf %40, %45 : vector<8x128xf32>
    %47 = vector.extract_strided_slice %0 {offsets = [0, 6], sizes = [8, 1], strides = [1, 1]} : vector<8x27xf32> to vector<8x1xf32>
    %48 = vector.extract_strided_slice %3 {offsets = [6, 0], sizes = [1, 128], strides = [1, 1]} : vector<16x128xf32> to vector<1x128xf32>
    %49 = vector.broadcast %47 : vector<8x1xf32> to vector<8x128xf32>
    %50 = vector.broadcast %48 : vector<1x128xf32> to vector<8x128xf32>
    %51 = arith.mulf %49, %50 : vector<8x128xf32>
    %52 = arith.addf %46, %51 : vector<8x128xf32>
    %53 = vector.extract_strided_slice %0 {offsets = [0, 7], sizes = [8, 1], strides = [1, 1]} : vector<8x27xf32> to vector<8x1xf32>
    %54 = vector.extract_strided_slice %3 {offsets = [7, 0], sizes = [1, 128], strides = [1, 1]} : vector<16x128xf32> to vector<1x128xf32>
    %55 = vector.broadcast %53 : vector<8x1xf32> to vector<8x128xf32>
    %56 = vector.broadcast %54 : vector<1x128xf32> to vector<8x128xf32>
    %57 = arith.mulf %55, %56 : vector<8x128xf32>
    %58 = arith.addf %52, %57 : vector<8x128xf32>
    %59 = vector.extract_strided_slice %0 {offsets = [0, 8], sizes = [8, 1], strides = [1, 1]} : vector<8x27xf32> to vector<8x1xf32>
    %60 = vector.extract_strided_slice %3 {offsets = [8, 0], sizes = [1, 128], strides = [1, 1]} : vector<16x128xf32> to vector<1x128xf32>
    %61 = vector.broadcast %59 : vector<8x1xf32> to vector<8x128xf32>
    %62 = vector.broadcast %60 : vector<1x128xf32> to vector<8x128xf32>
    %63 = arith.mulf %61, %62 : vector<8x128xf32>
    %64 = arith.addf %58, %63 : vector<8x128xf32>
    %65 = vector.extract_strided_slice %0 {offsets = [0, 9], sizes = [8, 1], strides = [1, 1]} : vector<8x27xf32> to vector<8x1xf32>
    %66 = vector.extract_strided_slice %3 {offsets = [9, 0], sizes = [1, 128], strides = [1, 1]} : vector<16x128xf32> to vector<1x128xf32>
    %67 = vector.broadcast %65 : vector<8x1xf32> to vector<8x128xf32>
    %68 = vector.broadcast %66 : vector<1x128xf32> to vector<8x128xf32>
    %69 = arith.mulf %67, %68 : vector<8x128xf32>
    %70 = arith.addf %64, %69 : vector<8x128xf32>
    %71 = vector.extract_strided_slice %0 {offsets = [0, 10], sizes = [8, 1], strides = [1, 1]} : vector<8x27xf32> to vector<8x1xf32>
    %72 = vector.extract_strided_slice %3 {offsets = [10, 0], sizes = [1, 128], strides = [1, 1]} : vector<16x128xf32> to vector<1x128xf32>
    %73 = vector.broadcast %71 : vector<8x1xf32> to vector<8x128xf32>
    %74 = vector.broadcast %72 : vector<1x128xf32> to vector<8x128xf32>
    %75 = arith.mulf %73, %74 : vector<8x128xf32>
    %76 = arith.addf %70, %75 : vector<8x128xf32>
    %77 = vector.extract_strided_slice %0 {offsets = [0, 11], sizes = [8, 1], strides = [1, 1]} : vector<8x27xf32> to vector<8x1xf32>
    %78 = vector.extract_strided_slice %3 {offsets = [11, 0], sizes = [1, 128], strides = [1, 1]} : vector<16x128xf32> to vector<1x128xf32>
    %79 = vector.broadcast %77 : vector<8x1xf32> to vector<8x128xf32>
    %80 = vector.broadcast %78 : vector<1x128xf32> to vector<8x128xf32>
    %81 = arith.mulf %79, %80 : vector<8x128xf32>
    %82 = arith.addf %76, %81 : vector<8x128xf32>
    %83 = vector.extract_strided_slice %0 {offsets = [0, 12], sizes = [8, 1], strides = [1, 1]} : vector<8x27xf32> to vector<8x1xf32>
    %84 = vector.extract_strided_slice %3 {offsets = [12, 0], sizes = [1, 128], strides = [1, 1]} : vector<16x128xf32> to vector<1x128xf32>
    %85 = vector.broadcast %83 : vector<8x1xf32> to vector<8x128xf32>
    %86 = vector.broadcast %84 : vector<1x128xf32> to vector<8x128xf32>
    %87 = arith.mulf %85, %86 : vector<8x128xf32>
    %88 = arith.addf %82, %87 : vector<8x128xf32>
    %89 = vector.extract_strided_slice %0 {offsets = [0, 13], sizes = [8, 1], strides = [1, 1]} : vector<8x27xf32> to vector<8x1xf32>
    %90 = vector.extract_strided_slice %3 {offsets = [13, 0], sizes = [1, 128], strides = [1, 1]} : vector<16x128xf32> to vector<1x128xf32>
    %91 = vector.broadcast %89 : vector<8x1xf32> to vector<8x128xf32>
    %92 = vector.broadcast %90 : vector<1x128xf32> to vector<8x128xf32>
    %93 = arith.mulf %91, %92 : vector<8x128xf32>
    %94 = arith.addf %88, %93 : vector<8x128xf32>
    %95 = vector.extract_strided_slice %0 {offsets = [0, 14], sizes = [8, 1], strides = [1, 1]} : vector<8x27xf32> to vector<8x1xf32>
    %96 = vector.extract_strided_slice %3 {offsets = [14, 0], sizes = [1, 128], strides = [1, 1]} : vector<16x128xf32> to vector<1x128xf32>
    %97 = vector.broadcast %95 : vector<8x1xf32> to vector<8x128xf32>
    %98 = vector.broadcast %96 : vector<1x128xf32> to vector<8x128xf32>
    %99 = arith.mulf %97, %98 : vector<8x128xf32>
    %100 = arith.addf %94, %99 : vector<8x128xf32>
    %101 = vector.extract_strided_slice %0 {offsets = [0, 15], sizes = [8, 1], strides = [1, 1]} : vector<8x27xf32> to vector<8x1xf32>
    %102 = vector.extract_strided_slice %3 {offsets = [15, 0], sizes = [1, 128], strides = [1, 1]} : vector<16x128xf32> to vector<1x128xf32>
    %103 = vector.broadcast %101 : vector<8x1xf32> to vector<8x128xf32>
    %104 = vector.broadcast %102 : vector<1x128xf32> to vector<8x128xf32>
    %105 = arith.mulf %103, %104 : vector<8x128xf32>
    %106 = arith.addf %100, %105 : vector<8x128xf32>
    %cst = arith.constant 0.000000e+00 : f32
    %107 = vector.broadcast %cst : f32 to vector<8x128xf32>
    %108 = arith.maximumf %106, %107 : vector<8x128xf32>
    %c16 = arith.constant 16 : index
    %c0_6 = arith.constant 0 : index
    %109 = vector.load %arg1[%c16, %c0_6] : memref<544x128xf32, #tpu.memory_space<vmem>>, vector<128x128xf32>
    %cst_7 = arith.constant dense<0.000000e+00> : vector<8x128xf32>
    %110 = tpu.matmul %108, %109, %cst_7 {dimension_numbers = #tpu.dot_dimension_numbers<[1], [0], [0], [1], [0, 0, 1, 1], [], []>} : vector<8x128xf32>, vector<128x128xf32>, vector<8x128xf32> -> vector<8x128xf32>
    %c2 = arith.constant 2 : index
    %c0_8 = arith.constant 0 : index
    %111 = vector.load %arg2[%c2, %c0_8] : memref<8x128xf32, #tpu.memory_space<vmem>>, vector<1x128xf32>
    %112 = vector.broadcast %111 : vector<1x128xf32> to vector<8x128xf32>
    %113 = arith.addf %110, %112 : vector<8x128xf32>
    %cst_9 = arith.constant 0.000000e+00 : f32
    %114 = vector.broadcast %cst_9 : f32 to vector<8x128xf32>
    %115 = arith.maximumf %113, %114 : vector<8x128xf32>
    %c144 = arith.constant 144 : index
    %c0_10 = arith.constant 0 : index
    %116 = vector.load %arg1[%c144, %c0_10] : memref<544x128xf32, #tpu.memory_space<vmem>>, vector<128x128xf32>
    %cst_11 = arith.constant dense<0.000000e+00> : vector<8x128xf32>
    %117 = tpu.matmul %115, %116, %cst_11 {dimension_numbers = #tpu.dot_dimension_numbers<[1], [0], [0], [1], [0, 0, 1, 1], [], []>} : vector<8x128xf32>, vector<128x128xf32>, vector<8x128xf32> -> vector<8x128xf32>
    %c3 = arith.constant 3 : index
    %c0_12 = arith.constant 0 : index
    %118 = vector.load %arg2[%c3, %c0_12] : memref<8x128xf32, #tpu.memory_space<vmem>>, vector<1x128xf32>
    %119 = vector.broadcast %118 : vector<1x128xf32> to vector<8x128xf32>
    %120 = arith.addf %117, %119 : vector<8x128xf32>
    %121 = vector.extract_strided_slice %120 {offsets = [0, 0], sizes = [8, 10], strides = [1, 1]} : vector<8x128xf32> to vector<8x10xf32>
    %122 = vector.extract_strided_slice %120 {offsets = [0, 10], sizes = [8, 10], strides = [1, 1]} : vector<8x128xf32> to vector<8x10xf32>
    %cst_13 = arith.constant 5.000000e-01 : f32
    %123 = vector.broadcast %cst_13 : f32 to vector<8x10xf32>
    %124 = arith.mulf %123, %122 : vector<8x10xf32>
    %125 = math.exp %124 : vector<8x10xf32>
    %126 = arith.mulf %2, %125 : vector<8x10xf32>
    %127 = arith.addf %121, %126 : vector<8x10xf32>
    %c272 = arith.constant 272 : index
    %c0_14 = arith.constant 0 : index
    %128 = vector.load %arg1[%c272, %c0_14] : memref<544x128xf32, #tpu.memory_space<vmem>>, vector<16x128xf32>
    %c4 = arith.constant 4 : index
    %c0_15 = arith.constant 0 : index
    %129 = vector.load %arg2[%c4, %c0_15] : memref<8x128xf32, #tpu.memory_space<vmem>>, vector<1x128xf32>
    %130 = vector.broadcast %1 : vector<8x1xf32> to vector<8x128xf32>
    %131 = vector.broadcast %129 : vector<1x128xf32> to vector<8x128xf32>
    %132 = arith.mulf %130, %131 : vector<8x128xf32>
    %c5 = arith.constant 5 : index
    %c0_16 = arith.constant 0 : index
    %133 = vector.load %arg2[%c5, %c0_16] : memref<8x128xf32, #tpu.memory_space<vmem>>, vector<1x128xf32>
    %134 = vector.broadcast %133 : vector<1x128xf32> to vector<8x128xf32>
    %135 = arith.addf %132, %134 : vector<8x128xf32>
    %136 = vector.extract_strided_slice %127 {offsets = [0, 0], sizes = [8, 1], strides = [1, 1]} : vector<8x10xf32> to vector<8x1xf32>
    %137 = vector.extract_strided_slice %128 {offsets = [0, 0], sizes = [1, 128], strides = [1, 1]} : vector<16x128xf32> to vector<1x128xf32>
    %138 = vector.broadcast %136 : vector<8x1xf32> to vector<8x128xf32>
    %139 = vector.broadcast %137 : vector<1x128xf32> to vector<8x128xf32>
    %140 = arith.mulf %138, %139 : vector<8x128xf32>
    %141 = arith.addf %135, %140 : vector<8x128xf32>
    %142 = vector.extract_strided_slice %127 {offsets = [0, 1], sizes = [8, 1], strides = [1, 1]} : vector<8x10xf32> to vector<8x1xf32>
    %143 = vector.extract_strided_slice %128 {offsets = [1, 0], sizes = [1, 128], strides = [1, 1]} : vector<16x128xf32> to vector<1x128xf32>
    %144 = vector.broadcast %142 : vector<8x1xf32> to vector<8x128xf32>
    %145 = vector.broadcast %143 : vector<1x128xf32> to vector<8x128xf32>
    %146 = arith.mulf %144, %145 : vector<8x128xf32>
    %147 = arith.addf %141, %146 : vector<8x128xf32>
    %148 = vector.extract_strided_slice %127 {offsets = [0, 2], sizes = [8, 1], strides = [1, 1]} : vector<8x10xf32> to vector<8x1xf32>
    %149 = vector.extract_strided_slice %128 {offsets = [2, 0], sizes = [1, 128], strides = [1, 1]} : vector<16x128xf32> to vector<1x128xf32>
    %150 = vector.broadcast %148 : vector<8x1xf32> to vector<8x128xf32>
    %151 = vector.broadcast %149 : vector<1x128xf32> to vector<8x128xf32>
    %152 = arith.mulf %150, %151 : vector<8x128xf32>
    %153 = arith.addf %147, %152 : vector<8x128xf32>
    %154 = vector.extract_strided_slice %127 {offsets = [0, 3], sizes = [8, 1], strides = [1, 1]} : vector<8x10xf32> to vector<8x1xf32>
    %155 = vector.extract_strided_slice %128 {offsets = [3, 0], sizes = [1, 128], strides = [1, 1]} : vector<16x128xf32> to vector<1x128xf32>
    %156 = vector.broadcast %154 : vector<8x1xf32> to vector<8x128xf32>
    %157 = vector.broadcast %155 : vector<1x128xf32> to vector<8x128xf32>
    %158 = arith.mulf %156, %157 : vector<8x128xf32>
    %159 = arith.addf %153, %158 : vector<8x128xf32>
    %160 = vector.extract_strided_slice %127 {offsets = [0, 4], sizes = [8, 1], strides = [1, 1]} : vector<8x10xf32> to vector<8x1xf32>
    %161 = vector.extract_strided_slice %128 {offsets = [4, 0], sizes = [1, 128], strides = [1, 1]} : vector<16x128xf32> to vector<1x128xf32>
    %162 = vector.broadcast %160 : vector<8x1xf32> to vector<8x128xf32>
    %163 = vector.broadcast %161 : vector<1x128xf32> to vector<8x128xf32>
    %164 = arith.mulf %162, %163 : vector<8x128xf32>
    %165 = arith.addf %159, %164 : vector<8x128xf32>
    %166 = vector.extract_strided_slice %127 {offsets = [0, 5], sizes = [8, 1], strides = [1, 1]} : vector<8x10xf32> to vector<8x1xf32>
    %167 = vector.extract_strided_slice %128 {offsets = [5, 0], sizes = [1, 128], strides = [1, 1]} : vector<16x128xf32> to vector<1x128xf32>
    %168 = vector.broadcast %166 : vector<8x1xf32> to vector<8x128xf32>
    %169 = vector.broadcast %167 : vector<1x128xf32> to vector<8x128xf32>
    %170 = arith.mulf %168, %169 : vector<8x128xf32>
    %171 = arith.addf %165, %170 : vector<8x128xf32>
    %172 = vector.extract_strided_slice %127 {offsets = [0, 6], sizes = [8, 1], strides = [1, 1]} : vector<8x10xf32> to vector<8x1xf32>
    %173 = vector.extract_strided_slice %128 {offsets = [6, 0], sizes = [1, 128], strides = [1, 1]} : vector<16x128xf32> to vector<1x128xf32>
    %174 = vector.broadcast %172 : vector<8x1xf32> to vector<8x128xf32>
    %175 = vector.broadcast %173 : vector<1x128xf32> to vector<8x128xf32>
    %176 = arith.mulf %174, %175 : vector<8x128xf32>
    %177 = arith.addf %171, %176 : vector<8x128xf32>
    %178 = vector.extract_strided_slice %127 {offsets = [0, 7], sizes = [8, 1], strides = [1, 1]} : vector<8x10xf32> to vector<8x1xf32>
    %179 = vector.extract_strided_slice %128 {offsets = [7, 0], sizes = [1, 128], strides = [1, 1]} : vector<16x128xf32> to vector<1x128xf32>
    %180 = vector.broadcast %178 : vector<8x1xf32> to vector<8x128xf32>
    %181 = vector.broadcast %179 : vector<1x128xf32> to vector<8x128xf32>
    %182 = arith.mulf %180, %181 : vector<8x128xf32>
    %183 = arith.addf %177, %182 : vector<8x128xf32>
    %184 = vector.extract_strided_slice %127 {offsets = [0, 8], sizes = [8, 1], strides = [1, 1]} : vector<8x10xf32> to vector<8x1xf32>
    %185 = vector.extract_strided_slice %128 {offsets = [8, 0], sizes = [1, 128], strides = [1, 1]} : vector<16x128xf32> to vector<1x128xf32>
    %186 = vector.broadcast %184 : vector<8x1xf32> to vector<8x128xf32>
    %187 = vector.broadcast %185 : vector<1x128xf32> to vector<8x128xf32>
    %188 = arith.mulf %186, %187 : vector<8x128xf32>
    %189 = arith.addf %183, %188 : vector<8x128xf32>
    %190 = vector.extract_strided_slice %127 {offsets = [0, 9], sizes = [8, 1], strides = [1, 1]} : vector<8x10xf32> to vector<8x1xf32>
    %191 = vector.extract_strided_slice %128 {offsets = [9, 0], sizes = [1, 128], strides = [1, 1]} : vector<16x128xf32> to vector<1x128xf32>
    %192 = vector.broadcast %190 : vector<8x1xf32> to vector<8x128xf32>
    %193 = vector.broadcast %191 : vector<1x128xf32> to vector<8x128xf32>
    %194 = arith.mulf %192, %193 : vector<8x128xf32>
    %195 = arith.addf %189, %194 : vector<8x128xf32>
    %cst_17 = arith.constant 0.000000e+00 : f32
    %196 = vector.broadcast %cst_17 : f32 to vector<8x128xf32>
    %197 = arith.maximumf %195, %196 : vector<8x128xf32>
    %c288 = arith.constant 288 : index
    %c0_18 = arith.constant 0 : index
    %198 = vector.load %arg1[%c288, %c0_18] : memref<544x128xf32, #tpu.memory_space<vmem>>, vector<128x128xf32>
    %cst_19 = arith.constant dense<0.000000e+00> : vector<8x128xf32>
    %199 = tpu.matmul %197, %198, %cst_19 {dimension_numbers = #tpu.dot_dimension_numbers<[1], [0], [0], [1], [0, 0, 1, 1], [], []>} : vector<8x128xf32>, vector<128x128xf32>, vector<8x128xf32> -> vector<8x128xf32>
    %c6 = arith.constant 6 : index
    %c0_20 = arith.constant 0 : index
    %200 = vector.load %arg2[%c6, %c0_20] : memref<8x128xf32, #tpu.memory_space<vmem>>, vector<1x128xf32>
    %201 = vector.broadcast %200 : vector<1x128xf32> to vector<8x128xf32>
    %202 = arith.addf %199, %201 : vector<8x128xf32>
    %cst_21 = arith.constant 0.000000e+00 : f32
    %203 = vector.broadcast %cst_21 : f32 to vector<8x128xf32>
    %204 = arith.maximumf %202, %203 : vector<8x128xf32>
    %c416 = arith.constant 416 : index
    %c0_22 = arith.constant 0 : index
    %205 = vector.load %arg1[%c416, %c0_22] : memref<544x128xf32, #tpu.memory_space<vmem>>, vector<128x128xf32>
    %cst_23 = arith.constant dense<0.000000e+00> : vector<8x128xf32>
    %206 = tpu.matmul %204, %205, %cst_23 {dimension_numbers = #tpu.dot_dimension_numbers<[1], [0], [0], [1], [0, 0, 1, 1], [], []>} : vector<8x128xf32>, vector<128x128xf32>, vector<8x128xf32> -> vector<8x128xf32>
    %c7 = arith.constant 7 : index
    %c0_24 = arith.constant 0 : index
    %207 = vector.load %arg2[%c7, %c0_24] : memref<8x128xf32, #tpu.memory_space<vmem>>, vector<1x128xf32>
    %208 = vector.broadcast %207 : vector<1x128xf32> to vector<8x128xf32>
    %209 = arith.addf %206, %208 : vector<8x128xf32>
    %c0_25 = arith.constant 0 : index
    %c0_26 = arith.constant 0 : index
    %210 = vector.load %arg3[%c0_25, %c0_26] : memref<8x128xf32, #tpu.memory_space<vmem>>, vector<8x128xf32>
    tpu.vector_store %arg3[%c0_25, %c0_26], %209 {strides = array<i32>} : memref<8x128xf32, #tpu.memory_space<vmem>>, vector<8x128xf32>,
    %211 = vector.extract_strided_slice %120 {offsets = [0, 0], sizes = [8, 20], strides = [1, 1]} : vector<8x128xf32> to vector<8x20xf32>
    %c0_27 = arith.constant 0 : index
    %c16_28 = arith.constant 16 : index
    %212 = vector.load %arg3[%c0_27, %c16_28] : memref<8x128xf32, #tpu.memory_space<vmem>>, vector<8x20xf32>
    tpu.vector_store %arg3[%c0_27, %c16_28], %211 {strides = array<i32>} : memref<8x128xf32, #tpu.memory_space<vmem>>, vector<8x20xf32>,
    %c0_29 = arith.constant 0 : index
    %c36 = arith.constant 36 : index
    %213 = vector.load %arg3[%c0_29, %c36] : memref<8x128xf32, #tpu.memory_space<vmem>>, vector<8x10xf32>
    tpu.vector_store %arg3[%c0_29, %c36], %127 {strides = array<i32>} : memref<8x128xf32, #tpu.memory_space<vmem>>, vector<8x10xf32>,
    return
  }
}

</mosaic_0001>

<llo_original>
// kernel: cvae_forward.1
$region0: #{cvae_forward.1}
  #allocation0 [shape = 'u32[]', space=smem, size = 0x4, offset = 0x4, fixed_abs, tag = 'smem constant byte address 0x4 - core index']
  #allocation1 [shape = 'u32[144,128]{1,0:T(1,128)}', space=vmem, size = 0x12000, scoped, tag = 'internal scratch']
  %s0 = inlined_call_operand.vmem [shape: f32[8,27], index: 0, kind: input, shape index: {}]
  %s1 = inlined_call_operand.hbm [shape: f32[544,128], index: 1, kind: input, shape index: {}]
  %s2 = inlined_call_operand.vmem [shape: f32[8,128], index: 2, kind: input, shape index: {}]
  %s3 = inlined_call_operand.vmem [shape: f32[8,128], index: 3, kind: output, shape index: {}]
  %s4 = sld [smem:[#allocation0]]
  $region26: #{cvae_forward.1} parent=0
    _
  %s6 = ssub.s32 1, %s4
  %s7 = scalar_select 0, %s6, %s4
  $region1: #{cvae_forward.1} parent=0
    #allocation2 [shape = 'u8[278528]{0}', space=vmem, size = 0x44000, scoped, tag = 'input window, operand 1, single buffered']
    #allocation3 [shape = 's32[1]{0}', space=sflag, size = 0x4, scoped, tag = 'scoped memory for cvae_forward.1']
    %8 = vsyncpa [#allocation3], 0
    // Predicated region
    $region2: #{cvae_forward.1} parent=1 // pred_check
      _
    $region3: #{cvae_forward.1} parent=1 // pred_check_branch
      %10 = sbr.rel (0) target = $region5
    $region4: #{cvae_forward.1} parent=1 // pred_region
      _
    $region5: #{cvae_forward.1} parent=1 // pred_fallthru
      _
    // Predicated region
    $region6: #{cvae_forward.1} parent=1 // pred_check
      _
    $region7: #{cvae_forward.1} parent=1 // pred_check_branch
      %12 = sbr.rel (0) target = $region9
    $region8: #{cvae_forward.1} parent=1 // pred_region
      %s14 = ssub.s32 8704, 8704
      %15 = vsyncadd [#allocation3], %s14
      %s16 = sshll.u32 [#allocation2], 4
      %s17 = int_to_ptr.vmem [resolvable:$true] %s16
      %22 = dma.hbm_to_vmem [thread:$0]  %s1, 8704, %s17, [#allocation3], 128, 128, 8
    $region9: #{cvae_forward.1} parent=1 // pred_fallthru
      _
    // Predicated region
    $region10: #{cvae_forward.1} parent=1 // pred_check
      _
    $region11: #{cvae_forward.1} parent=1 // pred_check_branch
      %24 = sbr.rel (0) target = $region13
    $region12: #{cvae_forward.1} parent=1 // pred_region
      _
    $region13: #{cvae_forward.1} parent=1 // pred_fallthru
      _
    // Predicated region
    $region14: #{cvae_forward.1} parent=1 // pred_check
      _
    $region15: #{cvae_forward.1} parent=1 // pred_check_branch
      %26 = sbr.rel (0) target = $region17
    $region16: #{cvae_forward.1} parent=1 // pred_region
      %27 = dma.done [#allocation3], 8704
    $region17: #{cvae_forward.1} parent=1 // pred_fallthru
      _
    %v28 = vld [vmem:[%s0] sm:$0xff]
    %v29 = vld [vmem:[#allocation2] sm:$0xff]
    %v30 = vld [vmem:[#allocation2 + $0x8] sm:$0xff]
    %v31 = vld [vmem:[%s2] sm:$0x1]
    %33 = vset.pattern.permute.xlu0 16
    %34 = vperm.xlu0 %33, %v28
    %v35 = vpop.permute.xlu0 %34
    %v37 = vlaneseq
    %v38 = vshrl.u32 %v37, 7
    %v39 = vsub.s32 0, %v38
    %v40 = vrot.slane %v31, %v39
    %v41 = vmul.f32 %v35, %v40
    %v42 = vld [vmem:[%s2 + $0x1] sm:$0x1]
    %v43 = vlaneseq
    %v44 = vshrl.u32 %v43, 7
    %v45 = vsub.s32 0, %v44
    %v46 = vrot.slane %v42, %v45
    %v47 = vadd.f32 %v41, %v46
    %48 = vset.pattern.permute.xlu0 0
    %49 = vperm.xlu0 %48, %v28
    %v50 = vpop.permute.xlu0 %49
    %v52 = vlaneseq
    %v53 = vshrl.u32 %v52, 7
    %v54 = vsub.s32 0, %v53
    %v55 = vrot.slane %v29, %v54
    %v56 = vmul.f32 %v50, %v55
    %v57 = vadd.f32 %v47, %v56
    %58 = vset.pattern.permute.xlu0 1
    %59 = vperm.xlu0 %58, %v28
    %v60 = vpop.permute.xlu0 %59
    %v62 = vlaneseq
    %v63 = vshrl.u32 %v62, 7
    %v64 = vsub.s32 1, %v63
    %v65 = vrot.slane %v29, %v64
    %v66 = vmul.f32 %v60, %v65
    %v67 = vadd.f32 %v57, %v66
    %68 = vset.pattern.permute.xlu0 2
    %69 = vperm.xlu0 %68, %v28
    %v70 = vpop.permute.xlu0 %69
    %v72 = vlaneseq
    %v73 = vshrl.u32 %v72, 7
    %v74 = vsub.s32 2, %v73
    %v75 = vrot.slane %v29, %v74
    %v76 = vmul.f32 %v70, %v75
    %v77 = vadd.f32 %v67, %v76
    %78 = vset.pattern.permute.xlu0 3
    %79 = vperm.xlu0 %78, %v28
    %v80 = vpop.permute.xlu0 %79
    %v82 = vlaneseq
    %v83 = vshrl.u32 %v82, 7
    %v84 = vsub.s32 3, %v83
    %v85 = vrot.slane %v29, %v84
    %v86 = vmul.f32 %v80, %v85
    %v87 = vadd.f32 %v77, %v86
    %88 = vset.pattern.permute.xlu0 4
    %89 = vperm.xlu0 %88, %v28
    %v90 = vpop.permute.xlu0 %89
    %v92 = vlaneseq
    %v93 = vshrl.u32 %v92, 7
    %v94 = vsub.s32 4, %v93
    %v95 = vrot.slane %v29, %v94
    %v96 = vmul.f32 %v90, %v95
    %v97 = vadd.f32 %v87, %v96
    %98 = vset.pattern.permute.xlu0 5
    %99 = vperm.xlu0 %98, %v28
    %v100 = vpop.permute.xlu0 %99
    %v102 = vlaneseq
    %v103 = vshrl.u32 %v102, 7
    %v104 = vsub.s32 5, %v103
    %v105 = vrot.slane %v29, %v104
    %v106 = vmul.f32 %v100, %v105
    %v107 = vadd.f32 %v97, %v106
    %108 = vset.pattern.permute.xlu0 6
    %109 = vperm.xlu0 %108, %v28
    %v110 = vpop.permute.xlu0 %109
    %v112 = vlaneseq
    %v113 = vshrl.u32 %v112, 7
    %v114 = vsub.s32 6, %v113
    %v115 = vrot.slane %v29, %v114
    %v116 = vmul.f32 %v110, %v115
    %v117 = vadd.f32 %v107, %v116
    %118 = vset.pattern.permute.xlu0 7
    %119 = vperm.xlu0 %118, %v28
    %v120 = vpop.permute.xlu0 %119
    %v122 = vlaneseq
    %v123 = vshrl.u32 %v122, 7
    %v124 = vsub.s32 7, %v123
    %v125 = vrot.slane %v29, %v124
    %v126 = vmul.f32 %v120, %v125
    %v127 = vadd.f32 %v117, %v126
    %128 = vset.pattern.permute.xlu0 8
    %129 = vperm.xlu0 %128, %v28
    %v130 = vpop.permute.xlu0 %129
    %v132 = vlaneseq
    %v133 = vshrl.u32 %v132, 7
    %v134 = vsub.s32 0, %v133
    %v135 = vrot.slane %v30, %v134
    %v136 = vmul.f32 %v130, %v135
    %v137 = vadd.f32 %v127, %v136
    %138 = vset.pattern.permute.xlu0 9
    %139 = vperm.xlu0 %138, %v28
    %v140 = vpop.permute.xlu0 %139
    %v142 = vlaneseq
    %v143 = vshrl.u32 %v142, 7
    %v144 = vsub.s32 1, %v143
    %v145 = vrot.slane %v30, %v144
    %v146 = vmul.f32 %v140, %v145
    %v147 = vadd.f32 %v137, %v146
    %148 = vset.pattern.permute.xlu0 10
    %149 = vperm.xlu0 %148, %v28
    %v150 = vpop.permute.xlu0 %149
    %v152 = vlaneseq
    %v153 = vshrl.u32 %v152, 7
    %v154 = vsub.s32 2, %v153
    %v155 = vrot.slane %v30, %v154
    %v156 = vmul.f32 %v150, %v155
    %v157 = vadd.f32 %v147, %v156
    %158 = vset.pattern.permute.xlu0 11
    %159 = vperm.xlu0 %158, %v28
    %v160 = vpop.permute.xlu0 %159
    %v162 = vlaneseq
    %v163 = vshrl.u32 %v162, 7
    %v164 = vsub.s32 3, %v163
    %v165 = vrot.slane %v30, %v164
    %v166 = vmul.f32 %v160, %v165
    %v167 = vadd.f32 %v157, %v166
    %168 = vset.pattern.permute.xlu0 12
    %169 = vperm.xlu0 %168, %v28
    %v170 = vpop.permute.xlu0 %169
    %v172 = vlaneseq
    %v173 = vshrl.u32 %v172, 7
    %v174 = vsub.s32 4, %v173
    %v175 = vrot.slane %v30, %v174
    %v176 = vmul.f32 %v170, %v175
    %v177 = vadd.f32 %v167, %v176
    %178 = vset.pattern.permute.xlu0 13
    %179 = vperm.xlu0 %178, %v28
    %v180 = vpop.permute.xlu0 %179
    %v182 = vlaneseq
    %v183 = vshrl.u32 %v182, 7
    %v184 = vsub.s32 5, %v183
    %v185 = vrot.slane %v30, %v184
    %v186 = vmul.f32 %v180, %v185
    %v187 = vadd.f32 %v177, %v186
    %188 = vset.pattern.permute.xlu0 14
    %189 = vperm.xlu0 %188, %v28
    %v190 = vpop.permute.xlu0 %189
    %v192 = vlaneseq
    %v193 = vshrl.u32 %v192, 7
    %v194 = vsub.s32 6, %v193
    %v195 = vrot.slane %v30, %v194
    %v196 = vmul.f32 %v190, %v195
    %v197 = vadd.f32 %v187, %v196
    %198 = vset.pattern.permute.xlu0 15
    %199 = vperm.xlu0 %198, %v28
    %v200 = vpop.permute.xlu0 %199
    %v202 = vlaneseq
    %v203 = vshrl.u32 %v202, 7
    %v204 = vsub.s32 7, %v203
    %v205 = vrot.slane %v30, %v204
    %v206 = vmul.f32 %v200, %v205
    %v207 = vadd.f32 %v197, %v206
    %v208 = vmax.f32 %v207, 0.0
    %v209 = vld [vmem:[#allocation2 + $0x10] sm:$0xff]
    %v210 = vld [vmem:[#allocation2 + $0x18] sm:$0xff]
    %v211 = vld [vmem:[#allocation2 + $0x20] sm:$0xff]
    %v212 = vld [vmem:[#allocation2 + $0x28] sm:$0xff]
    %v213 = vld [vmem:[#allocation2 + $0x30] sm:$0xff]
    %v214 = vld [vmem:[#allocation2 + $0x38] sm:$0xff]
    %v215 = vld [vmem:[#allocation2 + $0x40] sm:$0xff]
    %v216 = vld [vmem:[#allocation2 + $0x48] sm:$0xff]
    %v217 = vld [vmem:[#allocation2 + $0x50] sm:$0xff]
    %v218 = vld [vmem:[#allocation2 + $0x58] sm:$0xff]
    %v219 = vld [vmem:[#allocation2 + $0x60] sm:$0xff]
    %v220 = vld [vmem:[#allocation2 + $0x68] sm:$0xff]
    %v221 = vld [vmem:[#allocation2 + $0x70] sm:$0xff]
    %v222 = vld [vmem:[#allocation2 + $0x78] sm:$0xff]
    %v223 = vld [vmem:[#allocation2 + $0x80] sm:$0xff]
    %v224 = vld [vmem:[#allocation2 + $0x88] sm:$0xff]
    %v225 = vld [vmem:[%s2 + $0x2] sm:$0x1]
    %v226 = vlaneseq
    %v227 = vshrl.u32 %v226, 7
    %v228 = vsub.s32 0, %v227
    %v229 = vrot.slane %v225, %v228
    %230 = vmatprep.subr.mxu0 0.0
    %231 = vmatpush1.msra.mxu0 %v209
    %232 = vmatprep.subr.mxu0 0.0
    %233 = vmatpush1.msra.mxu0 %v210
    %234 = vmatprep.subr.mxu0 0.0
    %235 = vmatpush1.msra.mxu0 %v211
    %236 = vmatprep.subr.mxu0 0.0
    %237 = vmatpush1.msra.mxu0 %v212
    %238 = vmatprep.subr.mxu0 0.0
    %239 = vmatpush1.msra.mxu0 %v213
    %240 = vmatprep.subr.mxu0 0.0
    %241 = vmatpush1.msra.mxu0 %v214
    %242 = vmatprep.subr.mxu0 0.0
    %243 = vmatpush1.msra.mxu0 %v215
    %244 = vmatprep.subr.mxu0 0.0
    %245 = vmatpush1.msra.mxu0 %v216
    %246 = vmatprep.subr.mxu0 0.0
    %247 = vmatpush1.msra.mxu0 %v217
    %248 = vmatprep.subr.mxu0 0.0
    %249 = vmatpush1.msra.mxu0 %v218
    %250 = vmatprep.subr.mxu0 0.0
    %251 = vmatpush1.msra.mxu0 %v219
    %252 = vmatprep.subr.mxu0 0.0
    %253 = vmatpush1.msra.mxu0 %v220
    %254 = vmatprep.subr.mxu0 0.0
    %255 = vmatpush1.msra.mxu0 %v221
    %256 = vmatprep.subr.mxu0 0.0
    %257 = vmatpush1.msra.mxu0 %v222
    %258 = vmatprep.subr.mxu0 0.0
    %259 = vmatpush1.msra.mxu0 %v223
    %260 = vmatprep.subr.mxu0 0.0
    %261 = vmatpush1.msra.mxu0 %v224
    %262 = vmatprep.subr.mxu0 0.0
    %263 = vmatpush1.msra.mxu0 0.0
    %264 = vmatprep.subr.mxu0 0.0
    %265 = vmatpush1.msra.mxu0 0.0
    %266 = vmatprep.subr.mxu0 0.0
    %267 = vmatpush1.msra.mxu0 0.0
    %268 = vmatprep.subr.mxu0 0.0
    %269 = vmatpush1.msra.mxu0 0.0
    %270 = vmatprep.subr.mxu0 0.0
    %271 = vmatpush1.msra.mxu0 0.0
    %272 = vmatprep.subr.mxu0 0.0
    %273 = vmatpush1.msra.mxu0 0.0
    %274 = vmatprep.subr.mxu0 0.0
    %275 = vmatpush1.msra.mxu0 0.0
    %276 = vmatprep.subr.mxu0 0.0
    %277 = vmatpush1.msra.mxu0 0.0
    %278 = vmatprep.subr.mxu0 0.0
    %279 = vmatpush1.msra.mxu0 0.0
    %280 = vmatprep.subr.mxu0 0.0
    %281 = vmatpush1.msra.mxu0 0.0
    %282 = vmatprep.subr.mxu0 0.0
    %283 = vmatpush1.msra.mxu0 0.0
    %284 = vmatprep.subr.mxu0 0.0
    %285 = vmatpush1.msra.mxu0 0.0
    %286 = vmatprep.subr.mxu0 0.0
    %287 = vmatpush1.msra.mxu0 0.0
    %288 = vmatprep.subr.mxu0 0.0
    %289 = vmatpush1.msra.mxu0 0.0
    %290 = vmatprep.subr.mxu0 0.0
    %291 = vmatpush1.msra.mxu0 0.0
    %292 = vmatprep.subr.mxu0 0.0
    %293 = vmatpush1.msra.mxu0 0.0
    %294 = vmatprep.mubr.f32.mxu0 0.0
    %295 = vmatmul.mubr.f32.gmra.mrb[0].mxu0 %v208
    %v296 = vpop.f32.mrb[0].mxu0
    %v297 = vadd.f32 %v229, %v296
    %v298 = vpop.f32.mrb[0].mxu0
    %299 = vdwg.mxu0
    %v300 = vmax.f32 %v297, 0.0
    %v301 = vld [vmem:[#allocation2 + $0x90] sm:$0xff]
    %v302 = vld [vmem:[#allocation2 + $0x98] sm:$0xff]
    %v303 = vld [vmem:[#allocation2 + $0xa0] sm:$0xff]
    %v304 = vld [vmem:[#allocation2 + $0xa8] sm:$0xff]
    %v305 = vld [vmem:[#allocation2 + $0xb0] sm:$0xff]
    %v306 = vld [vmem:[#allocation2 + $0xb8] sm:$0xff]
    %v307 = vld [vmem:[#allocation2 + $0xc0] sm:$0xff]
    %v308 = vld [vmem:[#allocation2 + $0xc8] sm:$0xff]
    %v309 = vld [vmem:[#allocation2 + $0xd0] sm:$0xff]
    %v310 = vld [vmem:[#allocation2 + $0xd8] sm:$0xff]
    %v311 = vld [vmem:[#allocation2 + $0xe0] sm:$0xff]
    %v312 = vld [vmem:[#allocation2 + $0xe8] sm:$0xff]
    %v313 = vld [vmem:[#allocation2 + $0xf0] sm:$0xff]
    %v314 = vld [vmem:[#allocation2 + $0xf8] sm:$0xff]
    %v315 = vld [vmem:[#allocation2 + $0x100] sm:$0xff]
    %v316 = vld [vmem:[#allocation2 + $0x108] sm:$0xff]
    %v317 = vld [vmem:[%s2 + $0x3] sm:$0x1]
    %v318 = vlaneseq
    %v319 = vshrl.u32 %v318, 7
    %v320 = vsub.s32 0, %v319
    %v321 = vrot.slane %v317, %v320
    %322 = vmatprep.subr.mxu0 0.0
    %323 = vmatpush1.msra.mxu0 %v301
    %324 = vmatprep.subr.mxu0 0.0
    %325 = vmatpush1.msra.mxu0 %v302
    %326 = vmatprep.subr.mxu0 0.0
    %327 = vmatpush1.msra.mxu0 %v303
    %328 = vmatprep.subr.mxu0 0.0
    %329 = vmatpush1.msra.mxu0 %v304
    %330 = vmatprep.subr.mxu0 0.0
    %331 = vmatpush1.msra.mxu0 %v305
    %332 = vmatprep.subr.mxu0 0.0
    %333 = vmatpush1.msra.mxu0 %v306
    %334 = vmatprep.subr.mxu0 0.0
    %335 = vmatpush1.msra.mxu0 %v307
    %336 = vmatprep.subr.mxu0 0.0
    %337 = vmatpush1.msra.mxu0 %v308
    %338 = vmatprep.subr.mxu0 0.0
    %339 = vmatpush1.msra.mxu0 %v309
    %340 = vmatprep.subr.mxu0 0.0
    %341 = vmatpush1.msra.mxu0 %v310
    %342 = vmatprep.subr.mxu0 0.0
    %343 = vmatpush1.msra.mxu0 %v311
    %344 = vmatprep.subr.mxu0 0.0
    %345 = vmatpush1.msra.mxu0 %v312
    %346 = vmatprep.subr.mxu0 0.0
    %347 = vmatpush1.msra.mxu0 %v313
    %348 = vmatprep.subr.mxu0 0.0
    %349 = vmatpush1.msra.mxu0 %v314
    %350 = vmatprep.subr.mxu0 0.0
    %351 = vmatpush1.msra.mxu0 %v315
    %352 = vmatprep.subr.mxu0 0.0
    %353 = vmatpush1.msra.mxu0 %v316
    %354 = vmatprep.subr.mxu0 0.0
    %355 = vmatpush1.msra.mxu0 0.0
    %356 = vmatprep.subr.mxu0 0.0
    %357 = vmatpush1.msra.mxu0 0.0
    %358 = vmatprep.subr.mxu0 0.0
    %359 = vmatpush1.msra.mxu0 0.0
    %360 = vmatprep.subr.mxu0 0.0
    %361 = vmatpush1.msra.mxu0 0.0
    %362 = vmatprep.subr.mxu0 0.0
    %363 = vmatpush1.msra.mxu0 0.0
    %364 = vmatprep.subr.mxu0 0.0
    %365 = vmatpush1.msra.mxu0 0.0
    %366 = vmatprep.subr.mxu0 0.0
    %367 = vmatpush1.msra.mxu0 0.0
    %368 = vmatprep.subr.mxu0 0.0
    %369 = vmatpush1.msra.mxu0 0.0
    %370 = vmatprep.subr.mxu0 0.0
    %371 = vmatpush1.msra.mxu0 0.0
    %372 = vmatprep.subr.mxu0 0.0
    %373 = vmatpush1.msra.mxu0 0.0
    %374 = vmatprep.subr.mxu0 0.0
    %375 = vmatpush1.msra.mxu0 0.0
    %376 = vmatprep.subr.mxu0 0.0
    %377 = vmatpush1.msra.mxu0 0.0
    %378 = vmatprep.subr.mxu0 0.0
    %379 = vmatpush1.msra.mxu0 0.0
    %380 = vmatprep.subr.mxu0 0.0
    %381 = vmatpush1.msra.mxu0 0.0
    %382 = vmatprep.subr.mxu0 0.0
    %383 = vmatpush1.msra.mxu0 0.0
    %384 = vmatprep.subr.mxu0 0.0
    %385 = vmatpush1.msra.mxu0 0.0
    %386 = vmatprep.mubr.f32.mxu0 0.0
    %387 = vmatmul.mubr.f32.gmra.mrb[0].mxu0 %v300
    %v388 = vpop.f32.mrb[0].mxu0
    %v389 = vadd.f32 %v321, %v388
    %v390 = vpop.f32.mrb[0].mxu0
    %391 = vdwg.mxu0
    %v392 = vmul.f32 %v389, 0.5
    %v393 = vmul.f32 %v392, 1.442695
    %v394 = vpow.pop %v393
    %396 = vrot.lane.b32.xlu0 %v394, 7
    %v397 = vpop.permute.xlu0 %396
    %v399 = vmul.f32 %v28, %v397
    %401 = vrot.lane.b32.xlu0 %v399, 111
    %v402 = vpop.permute.xlu0 %401
    %v404 = vadd.f32 %v389, %v402
    %v405 = vld [vmem:[#allocation2 + $0x110] sm:$0xff]
    %v406 = vld [vmem:[#allocation2 + $0x118] sm:$0xff]
    %v407 = vld [vmem:[%s2 + $0x4] sm:$0x1]
    %v408 = vlaneseq
    %v409 = vshrl.u32 %v408, 7
    %v410 = vsub.s32 0, %v409
    %v411 = vrot.slane %v407, %v410
    %v412 = vmul.f32 %v35, %v411
    %v413 = vld [vmem:[%s2 + $0x5] sm:$0x1]
    %v414 = vlaneseq
    %v415 = vshrl.u32 %v414, 7
    %v416 = vsub.s32 0, %v415
    %v417 = vrot.slane %v413, %v416
    %v418 = vadd.f32 %v412, %v417
    %420 = vset.pattern.permute.xlu0 0
    %421 = vperm.xlu0 %420, %v404
    %v422 = vpop.permute.xlu0 %421
    %v424 = vlaneseq
    %v425 = vshrl.u32 %v424, 7
    %v426 = vsub.s32 0, %v425
    %v427 = vrot.slane %v405, %v426
    %v428 = vmul.f32 %v422, %v427
    %v429 = vadd.f32 %v418, %v428
    %430 = vset.pattern.permute.xlu0 1
    %431 = vperm.xlu0 %430, %v404
    %v432 = vpop.permute.xlu0 %431
    %v434 = vlaneseq
    %v435 = vshrl.u32 %v434, 7
    %v436 = vsub.s32 1, %v435
    %v437 = vrot.slane %v405, %v436
    %v438 = vmul.f32 %v432, %v437
    %v439 = vadd.f32 %v429, %v438
    %440 = vset.pattern.permute.xlu0 2
    %441 = vperm.xlu0 %440, %v404
    %v442 = vpop.permute.xlu0 %441
    %v444 = vlaneseq
    %v445 = vshrl.u32 %v444, 7
    %v446 = vsub.s32 2, %v445
    %v447 = vrot.slane %v405, %v446
    %v448 = vmul.f32 %v442, %v447
    %v449 = vadd.f32 %v439, %v448
    %450 = vset.pattern.permute.xlu0 3
    %451 = vperm.xlu0 %450, %v404
    %v452 = vpop.permute.xlu0 %451
    %v454 = vlaneseq
    %v455 = vshrl.u32 %v454, 7
    %v456 = vsub.s32 3, %v455
    %v457 = vrot.slane %v405, %v456
    %v458 = vmul.f32 %v452, %v457
    %v459 = vadd.f32 %v449, %v458
    %460 = vset.pattern.permute.xlu0 4
    %461 = vperm.xlu0 %460, %v404
    %v462 = vpop.permute.xlu0 %461
    %v464 = vlaneseq
    %v465 = vshrl.u32 %v464, 7
    %v466 = vsub.s32 4, %v465
    %v467 = vrot.slane %v405, %v466
    %v468 = vmul.f32 %v462, %v467
    %v469 = vadd.f32 %v459, %v468
    %470 = vset.pattern.permute.xlu0 5
    %471 = vperm.xlu0 %470, %v404
    %v472 = vpop.permute.xlu0 %471
    %v474 = vlaneseq
    %v475 = vshrl.u32 %v474, 7
    %v476 = vsub.s32 5, %v475
    %v477 = vrot.slane %v405, %v476
    %v478 = vmul.f32 %v472, %v477
    %v479 = vadd.f32 %v469, %v478
    %480 = vset.pattern.permute.xlu0 6
    %481 = vperm.xlu0 %480, %v404
    %v482 = vpop.permute.xlu0 %481
    %v484 = vlaneseq
    %v485 = vshrl.u32 %v484, 7
    %v486 = vsub.s32 6, %v485
    %v487 = vrot.slane %v405, %v486
    %v488 = vmul.f32 %v482, %v487
    %v489 = vadd.f32 %v479, %v488
    %490 = vset.pattern.permute.xlu0 7
    %491 = vperm.xlu0 %490, %v404
    %v492 = vpop.permute.xlu0 %491
    %v494 = vlaneseq
    %v495 = vshrl.u32 %v494, 7
    %v496 = vsub.s32 7, %v495
    %v497 = vrot.slane %v405, %v496
    %v498 = vmul.f32 %v492, %v497
    %v499 = vadd.f32 %v489, %v498
    %500 = vset.pattern.permute.xlu0 8
    %501 = vperm.xlu0 %500, %v404
    %v502 = vpop.permute.xlu0 %501
    %v504 = vlaneseq
    %v505 = vshrl.u32 %v504, 7
    %v506 = vsub.s32 0, %v505
    %v507 = vrot.slane %v406, %v506
    %v508 = vmul.f32 %v502, %v507
    %v509 = vadd.f32 %v499, %v508
    %510 = vset.pattern.permute.xlu0 9
    %511 = vperm.xlu0 %510, %v404
    %v512 = vpop.permute.xlu0 %511
    %v514 = vlaneseq
    %v515 = vshrl.u32 %v514, 7
    %v516 = vsub.s32 1, %v515
    %v517 = vrot.slane %v406, %v516
    %v518 = vmul.f32 %v512, %v517
    %v519 = vadd.f32 %v509, %v518
    %v520 = vmax.f32 %v519, 0.0
    %v521 = vld [vmem:[#allocation2 + $0x120] sm:$0xff]
    %v522 = vld [vmem:[#allocation2 + $0x128] sm:$0xff]
    %v523 = vld [vmem:[#allocation2 + $0x130] sm:$0xff]
    %v524 = vld [vmem:[#allocation2 + $0x138] sm:$0xff]
    %v525 = vld [vmem:[#allocation2 + $0x140] sm:$0xff]
    %v526 = vld [vmem:[#allocation2 + $0x148] sm:$0xff]
    %v527 = vld [vmem:[#allocation2 + $0x150] sm:$0xff]
    %v528 = vld [vmem:[#allocation2 + $0x158] sm:$0xff]
    %v529 = vld [vmem:[#allocation2 + $0x160] sm:$0xff]
    %v530 = vld [vmem:[#allocation2 + $0x168] sm:$0xff]
    %v531 = vld [vmem:[#allocation2 + $0x170] sm:$0xff]
    %v532 = vld [vmem:[#allocation2 + $0x178] sm:$0xff]
    %v533 = vld [vmem:[#allocation2 + $0x180] sm:$0xff]
    %v534 = vld [vmem:[#allocation2 + $0x188] sm:$0xff]
    %v535 = vld [vmem:[#allocation2 + $0x190] sm:$0xff]
    %v536 = vld [vmem:[#allocation2 + $0x198] sm:$0xff]
    %v537 = vld [vmem:[%s2 + $0x6] sm:$0x1]
    %v538 = vlaneseq
    %v539 = vshrl.u32 %v538, 7
    %v540 = vsub.s32 0, %v539
    %v541 = vrot.slane %v537, %v540
    %542 = vmatprep.subr.mxu0 0.0
    %543 = vmatpush1.msra.mxu0 %v521
    %544 = vmatprep.subr.mxu0 0.0
    %545 = vmatpush1.msra.mxu0 %v522
    %546 = vmatprep.subr.mxu0 0.0
    %547 = vmatpush1.msra.mxu0 %v523
    %548 = vmatprep.subr.mxu0 0.0
    %549 = vmatpush1.msra.mxu0 %v524
    %550 = vmatprep.subr.mxu0 0.0
    %551 = vmatpush1.msra.mxu0 %v525
    %552 = vmatprep.subr.mxu0 0.0
    %553 = vmatpush1.msra.mxu0 %v526
    %554 = vmatprep.subr.mxu0 0.0
    %555 = vmatpush1.msra.mxu0 %v527
    %556 = vmatprep.subr.mxu0 0.0
    %557 = vmatpush1.msra.mxu0 %v528
    %558 = vmatprep.subr.mxu0 0.0
    %559 = vmatpush1.msra.mxu0 %v529
    %560 = vmatprep.subr.mxu0 0.0
    %561 = vmatpush1.msra.mxu0 %v530
    %562 = vmatprep.subr.mxu0 0.0
    %563 = vmatpush1.msra.mxu0 %v531
    %564 = vmatprep.subr.mxu0 0.0
    %565 = vmatpush1.msra.mxu0 %v532
    %566 = vmatprep.subr.mxu0 0.0
    %567 = vmatpush1.msra.mxu0 %v533
    %568 = vmatprep.subr.mxu0 0.0
    %569 = vmatpush1.msra.mxu0 %v534
    %570 = vmatprep.subr.mxu0 0.0
    %571 = vmatpush1.msra.mxu0 %v535
    %572 = vmatprep.subr.mxu0 0.0
    %573 = vmatpush1.msra.mxu0 %v536
    %574 = vmatprep.subr.mxu0 0.0
    %575 = vmatpush1.msra.mxu0 0.0
    %576 = vmatprep.subr.mxu0 0.0
    %577 = vmatpush1.msra.mxu0 0.0
    %578 = vmatprep.subr.mxu0 0.0
    %579 = vmatpush1.msra.mxu0 0.0
    %580 = vmatprep.subr.mxu0 0.0
    %581 = vmatpush1.msra.mxu0 0.0
    %582 = vmatprep.subr.mxu0 0.0
    %583 = vmatpush1.msra.mxu0 0.0
    %584 = vmatprep.subr.mxu0 0.0
    %585 = vmatpush1.msra.mxu0 0.0
    %586 = vmatprep.subr.mxu0 0.0
    %587 = vmatpush1.msra.mxu0 0.0
    %588 = vmatprep.subr.mxu0 0.0
    %589 = vmatpush1.msra.mxu0 0.0
    %590 = vmatprep.subr.mxu0 0.0
    %591 = vmatpush1.msra.mxu0 0.0
    %592 = vmatprep.subr.mxu0 0.0
    %593 = vmatpush1.msra.mxu0 0.0
    %594 = vmatprep.subr.mxu0 0.0
    %595 = vmatpush1.msra.mxu0 0.0
    %596 = vmatprep.subr.mxu0 0.0
    %597 = vmatpush1.msra.mxu0 0.0
    %598 = vmatprep.subr.mxu0 0.0
    %599 = vmatpush1.msra.mxu0 0.0
    %600 = vmatprep.subr.mxu0 0.0
    %601 = vmatpush1.msra.mxu0 0.0
    %602 = vmatprep.subr.mxu0 0.0
    %603 = vmatpush1.msra.mxu0 0.0
    %604 = vmatprep.subr.mxu0 0.0
    %605 = vmatpush1.msra.mxu0 0.0
    %606 = vmatprep.mubr.f32.mxu0 0.0
    %607 = vmatmul.mubr.f32.gmra.mrb[0].mxu0 %v520
    %v608 = vpop.f32.mrb[0].mxu0
    %v609 = vadd.f32 %v541, %v608
    %v610 = vpop.f32.mrb[0].mxu0
    %611 = vdwg.mxu0
    %v612 = vmax.f32 %v609, 0.0
    %v613 = vld [vmem:[#allocation2 + $0x1a0] sm:$0xff]
    %v614 = vld [vmem:[#allocation2 + $0x1a8] sm:$0xff]
    %v615 = vld [vmem:[#allocation2 + $0x1b0] sm:$0xff]
    %v616 = vld [vmem:[#allocation2 + $0x1b8] sm:$0xff]
    %v617 = vld [vmem:[#allocation2 + $0x1c0] sm:$0xff]
    %v618 = vld [vmem:[#allocation2 + $0x1c8] sm:$0xff]
    %v619 = vld [vmem:[#allocation2 + $0x1d0] sm:$0xff]
    %v620 = vld [vmem:[#allocation2 + $0x1d8] sm:$0xff]
    %v621 = vld [vmem:[#allocation2 + $0x1e0] sm:$0xff]
    %v622 = vld [vmem:[#allocation2 + $0x1e8] sm:$0xff]
    %v623 = vld [vmem:[#allocation2 + $0x1f0] sm:$0xff]
    %v624 = vld [vmem:[#allocation2 + $0x1f8] sm:$0xff]
    %v625 = vld [vmem:[#allocation2 + $0x200] sm:$0xff]
    %v626 = vld [vmem:[#allocation2 + $0x208] sm:$0xff]
    %v627 = vld [vmem:[#allocation2 + $0x210] sm:$0xff]
    %v628 = vld [vmem:[#allocation2 + $0x218] sm:$0xff]
    %v629 = vld [vmem:[%s2 + $0x7] sm:$0x1]
    %v630 = vlaneseq
    %v631 = vshrl.u32 %v630, 7
    %v632 = vsub.s32 0, %v631
    %v633 = vrot.slane %v629, %v632
    %634 = vmatprep.subr.mxu0 0.0
    %635 = vmatpush1.msra.mxu0 %v613
    %636 = vmatprep.subr.mxu0 0.0
    %637 = vmatpush1.msra.mxu0 %v614
    %638 = vmatprep.subr.mxu0 0.0
    %639 = vmatpush1.msra.mxu0 %v615
    %640 = vmatprep.subr.mxu0 0.0
    %641 = vmatpush1.msra.mxu0 %v616
    %642 = vmatprep.subr.mxu0 0.0
    %643 = vmatpush1.msra.mxu0 %v617
    %644 = vmatprep.subr.mxu0 0.0
    %645 = vmatpush1.msra.mxu0 %v618
    %646 = vmatprep.subr.mxu0 0.0
    %647 = vmatpush1.msra.mxu0 %v619
    %648 = vmatprep.subr.mxu0 0.0
    %649 = vmatpush1.msra.mxu0 %v620
    %650 = vmatprep.subr.mxu0 0.0
    %651 = vmatpush1.msra.mxu0 %v621
    %652 = vmatprep.subr.mxu0 0.0
    %653 = vmatpush1.msra.mxu0 %v622
    %654 = vmatprep.subr.mxu0 0.0
    %655 = vmatpush1.msra.mxu0 %v623
    %656 = vmatprep.subr.mxu0 0.0
    %657 = vmatpush1.msra.mxu0 %v624
    %658 = vmatprep.subr.mxu0 0.0
    %659 = vmatpush1.msra.mxu0 %v625
    %660 = vmatprep.subr.mxu0 0.0
    %661 = vmatpush1.msra.mxu0 %v626
    %662 = vmatprep.subr.mxu0 0.0
    %663 = vmatpush1.msra.mxu0 %v627
    %664 = vmatprep.subr.mxu0 0.0
    %665 = vmatpush1.msra.mxu0 %v628
    %666 = vmatprep.subr.mxu0 0.0
    %667 = vmatpush1.msra.mxu0 0.0
    %668 = vmatprep.subr.mxu0 0.0
    %669 = vmatpush1.msra.mxu0 0.0
    %670 = vmatprep.subr.mxu0 0.0
    %671 = vmatpush1.msra.mxu0 0.0
    %672 = vmatprep.subr.mxu0 0.0
    %673 = vmatpush1.msra.mxu0 0.0
    %674 = vmatprep.subr.mxu0 0.0
    %675 = vmatpush1.msra.mxu0 0.0
    %676 = vmatprep.subr.mxu0 0.0
    %677 = vmatpush1.msra.mxu0 0.0
    %678 = vmatprep.subr.mxu0 0.0
    %679 = vmatpush1.msra.mxu0 0.0
    %680 = vmatprep.subr.mxu0 0.0
    %681 = vmatpush1.msra.mxu0 0.0
    %682 = vmatprep.subr.mxu0 0.0
    %683 = vmatpush1.msra.mxu0 0.0
    %684 = vmatprep.subr.mxu0 0.0
    %685 = vmatpush1.msra.mxu0 0.0
    %686 = vmatprep.subr.mxu0 0.0
    %687 = vmatpush1.msra.mxu0 0.0
    %688 = vmatprep.subr.mxu0 0.0
    %689 = vmatpush1.msra.mxu0 0.0
    %690 = vmatprep.subr.mxu0 0.0
    %691 = vmatpush1.msra.mxu0 0.0
    %692 = vmatprep.subr.mxu0 0.0
    %693 = vmatpush1.msra.mxu0 0.0
    %694 = vmatprep.subr.mxu0 0.0
    %695 = vmatpush1.msra.mxu0 0.0
    %696 = vmatprep.subr.mxu0 0.0
    %697 = vmatpush1.msra.mxu0 0.0
    %698 = vmatprep.mubr.f32.mxu0 0.0
    %699 = vmatmul.mubr.f32.gmra.mrb[0].mxu0 %v612
    %v700 = vpop.f32.mrb[0].mxu0
    %v701 = vadd.f32 %v633, %v700
    %v702 = vpop.f32.mrb[0].mxu0
    %703 = vdwg.mxu0
    %704 = vst [vmem:[%s3] sm:$0xff] %v701
    %706 = vrot.lane.b32.xlu0 %v389, 16
    %v707 = vpop.permute.xlu0 %706
    %vm709 = vcmask 294016
    %710 = vst.msk [vmem:[%s3] sm:$0xff] %vm709, %v707
    %711 = vrot.lane.b32.xlu0 %v404, 36
    %v712 = vpop.permute.xlu0 %711
    %vm714 = vcmask 376096
    %715 = vst.msk [vmem:[%s3] sm:$0xff] %vm714, %v712
    // Predicated region
    $region18: #{cvae_forward.1} parent=1 // pred_check
      _
    $region19: #{cvae_forward.1} parent=1 // pred_check_branch
      %717 = sbr.rel (0) target = $region21
    $region20: #{cvae_forward.1} parent=1 // pred_region
      _
    $region21: #{cvae_forward.1} parent=1 // pred_fallthru
      _
    // Predicated region
    $region22: #{cvae_forward.1} parent=1 // pred_check
      _
    $region23: #{cvae_forward.1} parent=1 // pred_check_branch
      %719 = sbr.rel (0) target = $region25
    $region24: #{cvae_forward.1} parent=1 // pred_region
      _
    $region25: #{cvae_forward.1} parent=1 // pred_fallthru
      _
    %720 = vsyncpa [#allocation3], 1

</llo_original>
